<compile_context>
chip_gen: v5e
topology: v5e:2x2
jax: 0.10.0
libtpu: 0.0.40
codegen_flags: <defaults>
</compile_context>

<pallas_src>
import functools

import jax
import jax.numpy as jnp
from jax.experimental import pallas as pl
from jax.experimental.pallas import tpu as pltpu


def _fused_conv_block_kernel(x_ref, b1_ref, sh1_ref, b2_ref, sh2_ref, o_ref,
                             xp1_ref, xp2_ref):
    """Fused (conv3x3 -> folded BN -> LeakyReLU) x 2 for a block of B images.

    x_ref:   (B, H, W*Cin)        lane-packed NHWC input block (lane = w*Cin+ci)
    b1_ref:  (3, W*Cin, W*Cout)   banded stage-1 weights (BN scale folded), bf16
    sh1_ref: (1, W*Cout)          stage-1 BN shift (+conv bias), f32
    b2_ref:  (3, W*Cout, W*Cout)  banded stage-2 weights, bf16
    sh2_ref: (1, W*Cout)          stage-2 shift, f32
    o_ref:   (B, H, W*Cout)       lane-packed output block
    xp1_ref: VMEM (B*(H+2), W*Cin)  stacked stage-1 input, zero halo rows per img
    xp2_ref: VMEM (B*(H+2), W*Cout) stacked stage-2 input, zero halo rows per img
    """
    B, H, WCin = x_ref.shape
    WCout = o_ref.shape[2]
    HP = H + 2
    M = B * HP - 2                      # matmul rows covering every output row

    zin = jnp.zeros((1, WCin), xp1_ref.dtype)
    zout = jnp.zeros((1, WCout), xp2_ref.dtype)

    # ---------------- stage 1: conv3x3 + folded BN + LeakyReLU --------------
    # Build padded stack: only the 2 halo rows per image are zeroed (cheap and
    # idempotent -> safe under megacore grid sharding); interiors overwritten.
    for b in range(B):
        s = b * HP
        xp1_ref[s:s + 1, :] = zin
        xp1_ref[s + 1:s + 1 + H, :] = x_ref[b]
        xp1_ref[s + H + 1:s + H + 2, :] = zin

    x1 = xp1_ref[...].astype(jnp.bfloat16)            # bf16 MXU operand
    acc = jnp.broadcast_to(sh1_ref[0], (M, WCout))    # shift pre-loaded into acc
    for kh in range(3):                               # 3 MXU pushes, K = W*Cin
        acc = acc + jnp.dot(x1[kh:kh + M], b1_ref[kh],
                            preferred_element_type=jnp.float32)
    y1 = jnp.where(acc > 0.0, acc, 0.01 * acc)        # LeakyReLU; Dropout(0.3) eval = id

    # ---------------- stage 2 (intermediate never leaves VMEM) --------------
    for b in range(B):
        s = b * HP
        xp2_ref[s:s + 1, :] = zout
        xp2_ref[s + 1:s + 1 + H, :] = y1[s:s + H]
        xp2_ref[s + H + 1:s + H + 2, :] = zout

    x2 = xp2_ref[...].astype(jnp.bfloat16)
    acc2 = jnp.broadcast_to(sh2_ref[0], (M, WCout))
    for kh in range(3):                               # K = W*Cout
        acc2 = acc2 + jnp.dot(x2[kh:kh + M], b2_ref[kh],
                              preferred_element_type=jnp.float32)
    y2 = jnp.where(acc2 > 0.0, acc2, 0.01 * acc2)     # LeakyReLU; Dropout(0.4) eval = id

    for b in range(B):
        s = b * HP
        o_ref[b] = y2[s:s + H].astype(o_ref.dtype)


def _prep_stage(params, W, eps=1e-5):
    """One-time parameter prep: fold BN into banded conv weights + lane shift.

    banded[kh][(w+kw-1)*Cin + ci, w*Cout + co] = w[kh,kw,ci,co] * scale[co]
    (out-of-range kw taps are dropped => zero padding along W).
    Banded weights are returned in bf16 (MXU operands); shift stays f32.
    """
    w, b, gamma, beta, rmean, rvar = params
    cin, cout = w.shape[2], w.shape[3]
    scale = gamma / jnp.sqrt(rvar + eps)                 # (Cout,)
    shift = beta + scale * (b - rmean)                   # (Cout,)
    w_folded = (w * scale).astype(jnp.float32)           # fold BN scale into W

    bands = []
    for kh in range(3):
        band = jnp.zeros((W * cin, W * cout), jnp.float32)
        for kw in range(3):
            sel = jnp.eye(W, W, k=1 - kw, dtype=jnp.float32)   # x(w+kw-1) -> out(w)
            band = band + jnp.kron(sel, w_folded[kh, kw])
        bands.append(band)
    banded = jnp.stack(bands, axis=0).astype(jnp.bfloat16)     # (3, W*Cin, W*Cout)
    shift_lanes = jnp.tile(shift.astype(jnp.float32), W).reshape(1, W * cout)
    return banded, shift_lanes


def _pick_block(n):
    """Images per grid step: amortize per-step overhead but keep >= 2 grid
    steps when possible so v7x megacore has work for both TensorCores."""
    b = min(16, max(1, n // 2))
    while n % b:
        b -= 1
    return b


@jax.jit
def conv_block_packed(x_packed, b1, sh1, b2, sh2):
    """Eval-mode forward on lane-packed (N, H, W*C) activations (f32 in/out)."""
    N, H, WCin = x_packed.shape
    WCout = sh1.shape[-1]
    B = _pick_block(N)

    # VMEM note: banded weights scale O((W*C)^2).  Here (bf16, double-buffered)
    # they are ~0.3 MiB; they must stay well under the scoped VMEM limit
    # (32 MiB default on v7x's 64 MiB VMEM).
    # TODO(synk): tile along W (1-column halo, Wt*Cout = 128/256 lanes) if the
    #             block is ever used at W*C large enough to approach that limit.

    return pl.pallas_call(
        _fused_conv_block_kernel,
        out_shape=jax.ShapeDtypeStruct((N, H, WCout), jnp.float32),
        grid=(N // B,),
        in_specs=[
            pl.BlockSpec((B, H, WCin), lambda n: (n, 0, 0)),
            pl.BlockSpec((3, WCin, WCout), lambda n: (0, 0, 0)),
            pl.BlockSpec((1, WCout), lambda n: (0, 0)),
            pl.BlockSpec((3, WCout, WCout), lambda n: (0, 0, 0)),
            pl.BlockSpec((1, WCout), lambda n: (0, 0)),
        ],
        out_specs=pl.BlockSpec((B, H, WCout), lambda n: (n, 0, 0)),
        scratch_shapes=[
            pltpu.VMEM((B * (H + 2), WCin), jnp.float32),
            pltpu.VMEM((B * (H + 2), WCout), jnp.float32),
        ],
        compiler_params=pltpu.CompilerParams(
            dimension_semantics=("parallel",),   # shard batch blocks on v7x megacore
        ),
    )(x_packed, b1, sh1, b2, sh2)


def nchw_to_packed(x_nchw):
    N, C, H, W = x_nchw.shape
    return jnp.transpose(x_nchw, (0, 2, 3, 1)).reshape(N, H, W * C)


def packed_to_nchw(x_packed, c):
    N, H, WC = x_packed.shape
    return jnp.transpose(x_packed.reshape(N, H, WC // c, c), (0, 3, 1, 2))


@jax.jit
def conv_block_nchw(x_nchw, b1, sh1, b2, sh2):
    """NCHW convenience wrapper.  In a full UNet, do the NCHW <-> lane-packed
    conversion ONCE at the model boundary and chain conv_block_packed calls
    (each boundary relayout is a full HBM read+write of the tensor)."""
    c_out = sh1.shape[-1] // x_nchw.shape[3]
    out = conv_block_packed(nchw_to_packed(x_nchw), b1, sh1, b2, sh2)
    return packed_to_nchw(out, c_out)


def make_params(key, c_in, c_out):
    """Deterministic synthetic parameters for one Conv->BN stage (HWIO)."""
    k_w, k_b, k_g, k_be = jax.random.split(key, 4)
    w = 0.1 * jax.random.normal(k_w, (3, 3, c_in, c_out), jnp.float32)
    b = 0.05 * jax.random.normal(k_b, (c_out,), jnp.float32)
    gamma = 1.0 + 0.1 * jax.random.normal(k_g, (c_out,), jnp.float32)
    beta = 0.1 * jax.random.normal(k_be, (c_out,), jnp.float32)
    running_mean = jnp.zeros((c_out,), jnp.float32)
    running_var = jnp.ones((c_out,), jnp.float32)
    return w, b, gamma, beta, running_mean, running_var


def _reference(x_nchw, params1, params2, eps=1e-5):
    """Pure-JAX eval-mode reference (no Pallas) for a correctness check."""
    def stage(x_nhwc, params):
        w, b, gamma, beta, rmean, rvar = params
        y = jax.lax.conv_general_dilated(
            x_nhwc, w, window_strides=(1, 1), padding=((1, 1), (1, 1)),
            dimension_numbers=("NHWC", "HWIO", "NHWC"),
            precision=jax.lax.Precision.HIGHEST) + b
        y = (y - rmean) / jnp.sqrt(rvar + eps) * gamma + beta
        return jnp.where(y > 0, y, 0.01 * y)

    x = jnp.transpose(x_nchw, (0, 2, 3, 1))
    x = stage(x, params1)
    x = stage(x, params2)
    return jnp.transpose(x, (0, 3, 1, 2))


if __name__ == "__main__":
    key = jax.random.PRNGKey(0)
    k_x, k_p1, k_p2 = jax.random.split(key, 3)

    N, C_in, H, W = 4, 4, 16, 16   # N=4 -> B=2 images/step, grid=(2,)
    C_out = 8                      # W * C_out = 128 -> fully lane-dense output

    x = jax.random.normal(k_x, (N, C_in, H, W), jnp.float32)
    params1 = make_params(k_p1, C_in, C_out)
    params2 = make_params(k_p2, C_out, C_out)

    # One-time parameter prep (BN fold + bf16 banded weights), outside forward.
    b1, sh1 = _prep_stage(params1, W)
    b2, sh2 = _prep_stage(params2, W)

    out = conv_block_nchw(x, b1, sh1, b2, sh2)
    out = jax.block_until_ready(out)

    assert out.shape == (N, C_out, H, W), out.shape
    assert jnp.all(jnp.isfinite(out))

    ref = _reference(x, params1, params2)
    max_err = float(jnp.max(jnp.abs(out - ref)))
    assert jnp.allclose(out, ref, atol=2e-2, rtol=2e-2), f"max_err={max_err}"

    print("KERNEL_OK")
</pallas_src>

<mosaic_0001>
module attributes {stable_mosaic.version = 11 : i64} {
  func.func @_fused_conv_block_kernel(%arg0: i32, %arg1: memref<2x16x64xf32, #tpu.memory_space<vmem>>, %arg2: memref<3x64x128xbf16, #tpu.memory_space<vmem>>, %arg3: memref<1x128xf32, #tpu.memory_space<vmem>>, %arg4: memref<3x128x128xbf16, #tpu.memory_space<vmem>>, %arg5: memref<1x128xf32, #tpu.memory_space<vmem>>, %arg6: memref<2x16x128xf32, #tpu.memory_space<vmem>>, %arg7: memref<36x64xf32, #tpu.memory_space<vmem>>, %arg8: memref<36x128xf32, #tpu.memory_space<vmem>>) attributes {dimension_semantics = [#tpu.dimension_semantics<parallel>], iteration_bounds = array<i64: 2>, scalar_prefetch = 0 : i64, scratch_operands = 2 : i64, tpu.core_type = #tpu.core_type<tc>, window_params = [{transform_indices = @transform_0, window_bounds = array<i64: 2, 16, 64>}, {pipeline_mode = #tpu.pipeline_mode<synchronous>, transform_indices = @transform_1, window_bounds = array<i64: 3, 64, 128>}, {pipeline_mode = #tpu.pipeline_mode<synchronous>, transform_indices = @transform_2, window_bounds = array<i64: 1, 128>}, {pipeline_mode = #tpu.pipeline_mode<synchronous>, transform_indices = @transform_3, window_bounds = array<i64: 3, 128, 128>}, {pipeline_mode = #tpu.pipeline_mode<synchronous>, transform_indices = @transform_4, window_bounds = array<i64: 1, 128>}, {transform_indices = @transform_5, window_bounds = array<i64: 2, 16, 128>}]} {
    %cst = arith.constant 0.000000e+00 : f32
    %0 = vector.broadcast %cst : f32 to vector<1x64xf32>
    %cst_0 = arith.constant 0.000000e+00 : f32
    %1 = vector.broadcast %cst_0 : f32 to vector<1x128xf32>
    %c0 = arith.constant 0 : index
    %c0_1 = arith.constant 0 : index
    %2 = vector.load %arg7[%c0, %c0_1] : memref<36x64xf32, #tpu.memory_space<vmem>>, vector<1x64xf32>
    tpu.vector_store %arg7[%c0, %c0_1], %0 {strides = array<i32>} : memref<36x64xf32, #tpu.memory_space<vmem>>, vector<1x64xf32>,
    %c0_2 = arith.constant 0 : index
    %c0_3 = arith.constant 0 : index
    %c0_4 = arith.constant 0 : index
    %3 = vector.load %arg1[%c0_2, %c0_3, %c0_4] : memref<2x16x64xf32, #tpu.memory_space<vmem>>, vector<1x16x64xf32>
    %4 = vector.shape_cast %3 : vector<1x16x64xf32> to vector<16x64xf32>
    %c1 = arith.constant 1 : index
    %c0_5 = arith.constant 0 : index
    %5 = vector.load %arg7[%c1, %c0_5] : memref<36x64xf32, #tpu.memory_space<vmem>>, vector<16x64xf32>
    tpu.vector_store %arg7[%c1, %c0_5], %4 {strides = array<i32>} : memref<36x64xf32, #tpu.memory_space<vmem>>, vector<16x64xf32>,
    %c17 = arith.constant 17 : index
    %c0_6 = arith.constant 0 : index
    %6 = vector.load %arg7[%c17, %c0_6] : memref<36x64xf32, #tpu.memory_space<vmem>>, vector<1x64xf32>
    tpu.vector_store %arg7[%c17, %c0_6], %0 {strides = array<i32>} : memref<36x64xf32, #tpu.memory_space<vmem>>, vector<1x64xf32>,
    %c18 = arith.constant 18 : index
    %c0_7 = arith.constant 0 : index
    %7 = vector.load %arg7[%c18, %c0_7] : memref<36x64xf32, #tpu.memory_space<vmem>>, vector<1x64xf32>
    tpu.vector_store %arg7[%c18, %c0_7], %0 {strides = array<i32>} : memref<36x64xf32, #tpu.memory_space<vmem>>, vector<1x64xf32>,
    %c1_8 = arith.constant 1 : index
    %c0_9 = arith.constant 0 : index
    %c0_10 = arith.constant 0 : index
    %8 = vector.load %arg1[%c1_8, %c0_9, %c0_10] : memref<2x16x64xf32, #tpu.memory_space<vmem>>, vector<1x16x64xf32>
    %9 = vector.shape_cast %8 : vector<1x16x64xf32> to vector<16x64xf32>
    %c19 = arith.constant 19 : index
    %c0_11 = arith.constant 0 : index
    %10 = vector.load %arg7[%c19, %c0_11] : memref<36x64xf32, #tpu.memory_space<vmem>>, vector<16x64xf32>
    tpu.vector_store %arg7[%c19, %c0_11], %9 {strides = array<i32>} : memref<36x64xf32, #tpu.memory_space<vmem>>, vector<16x64xf32>,
    %c35 = arith.constant 35 : index
    %c0_12 = arith.constant 0 : index
    %11 = vector.load %arg7[%c35, %c0_12] : memref<36x64xf32, #tpu.memory_space<vmem>>, vector<1x64xf32>
    tpu.vector_store %arg7[%c35, %c0_12], %0 {strides = array<i32>} : memref<36x64xf32, #tpu.memory_space<vmem>>, vector<1x64xf32>,
    %c0_13 = arith.constant 0 : index
    %c0_14 = arith.constant 0 : index
    %12 = vector.load %arg7[%c0_13, %c0_14] : memref<36x64xf32, #tpu.memory_space<vmem>>, vector<36x64xf32>
    %13 = arith.truncf %12 : vector<36x64xf32> to vector<36x64xbf16>
    %c0_15 = arith.constant 0 : index
    %c0_16 = arith.constant 0 : index
    %14 = vector.load %arg3[%c0_15, %c0_16] : memref<1x128xf32, #tpu.memory_space<vmem>>, vector<1x128xf32>
    %15 = vector.shape_cast %14 : vector<1x128xf32> to vector<128xf32>
    %16 = vector.shape_cast %15 : vector<128xf32> to vector<1x128xf32>
    %17 = vector.broadcast %16 : vector<1x128xf32> to vector<34x128xf32>
    %18 = vector.extract_strided_slice %13 {offsets = [0, 0], sizes = [34, 64], strides = [1, 1]} : vector<36x64xbf16> to vector<34x64xbf16>
    %c0_17 = arith.constant 0 : index
    %c0_18 = arith.constant 0 : index
    %c0_19 = arith.constant 0 : index
    %19 = vector.load %arg2[%c0_17, %c0_18, %c0_19] : memref<3x64x128xbf16, #tpu.memory_space<vmem>>, vector<1x64x128xbf16>
    %20 = vector.shape_cast %19 : vector<1x64x128xbf16> to vector<64x128xbf16>
    %cst_20 = arith.constant dense<0.000000e+00> : vector<34x128xf32>
    %21 = tpu.matmul %18, %20, %cst_20 {dimension_numbers = #tpu.dot_dimension_numbers<[1], [0], [0], [1], [0, 0, 1, 1], [], []>} : vector<34x64xbf16>, vector<64x128xbf16>, vector<34x128xf32> -> vector<34x128xf32>
    %22 = arith.addf %17, %21 : vector<34x128xf32>
    %23 = vector.extract_strided_slice %13 {offsets = [1, 0], sizes = [34, 64], strides = [1, 1]} : vector<36x64xbf16> to vector<34x64xbf16>
    %c1_21 = arith.constant 1 : index
    %c0_22 = arith.constant 0 : index
    %c0_23 = arith.constant 0 : index
    %24 = vector.load %arg2[%c1_21, %c0_22, %c0_23] : memref<3x64x128xbf16, #tpu.memory_space<vmem>>, vector<1x64x128xbf16>
    %25 = vector.shape_cast %24 : vector<1x64x128xbf16> to vector<64x128xbf16>
    %cst_24 = arith.constant dense<0.000000e+00> : vector<34x128xf32>
    %26 = tpu.matmul %23, %25, %cst_24 {dimension_numbers = #tpu.dot_dimension_numbers<[1], [0], [0], [1], [0, 0, 1, 1], [], []>} : vector<34x64xbf16>, vector<64x128xbf16>, vector<34x128xf32> -> vector<34x128xf32>
    %27 = arith.addf %22, %26 : vector<34x128xf32>
    %28 = vector.extract_strided_slice %13 {offsets = [2, 0], sizes = [34, 64], strides = [1, 1]} : vector<36x64xbf16> to vector<34x64xbf16>
    %c2 = arith.constant 2 : index
    %c0_25 = arith.constant 0 : index
    %c0_26 = arith.constant 0 : index
    %29 = vector.load %arg2[%c2, %c0_25, %c0_26] : memref<3x64x128xbf16, #tpu.memory_space<vmem>>, vector<1x64x128xbf16>
    %30 = vector.shape_cast %29 : vector<1x64x128xbf16> to vector<64x128xbf16>
    %cst_27 = arith.constant dense<0.000000e+00> : vector<34x128xf32>
    %31 = tpu.matmul %28, %30, %cst_27 {dimension_numbers = #tpu.dot_dimension_numbers<[1], [0], [0], [1], [0, 0, 1, 1], [], []>} : vector<34x64xbf16>, vector<64x128xbf16>, vector<34x128xf32> -> vector<34x128xf32>
    %32 = arith.addf %27, %31 : vector<34x128xf32>
    %cst_28 = arith.constant 0.000000e+00 : f32
    %33 = vector.broadcast %cst_28 : f32 to vector<34x128xf32>
    %34 = arith.cmpf ogt, %32, %33 : vector<34x128xf32>
    %cst_29 = arith.constant 0.00999999977 : f32
    %35 = vector.broadcast %cst_29 : f32 to vector<34x128xf32>
    %36 = arith.mulf %35, %32 : vector<34x128xf32>
    %37 = arith.select %34, %32, %36 : vector<34x128xi1>, vector<34x128xf32>
    %c0_30 = arith.constant 0 : index
    %c0_31 = arith.constant 0 : index
    %38 = vector.load %arg8[%c0_30, %c0_31] : memref<36x128xf32, #tpu.memory_space<vmem>>, vector<1x128xf32>
    tpu.vector_store %arg8[%c0_30, %c0_31], %1 {strides = array<i32>} : memref<36x128xf32, #tpu.memory_space<vmem>>, vector<1x128xf32>,
    %39 = vector.extract_strided_slice %37 {offsets = [0, 0], sizes = [16, 128], strides = [1, 1]} : vector<34x128xf32> to vector<16x128xf32>
    %c1_32 = arith.constant 1 : index
    %c0_33 = arith.constant 0 : index
    %40 = vector.load %arg8[%c1_32, %c0_33] : memref<36x128xf32, #tpu.memory_space<vmem>>, vector<16x128xf32>
    tpu.vector_store %arg8[%c1_32, %c0_33], %39 {strides = array<i32>} : memref<36x128xf32, #tpu.memory_space<vmem>>, vector<16x128xf32>,
    %c17_34 = arith.constant 17 : index
    %c0_35 = arith.constant 0 : index
    %41 = vector.load %arg8[%c17_34, %c0_35] : memref<36x128xf32, #tpu.memory_space<vmem>>, vector<1x128xf32>
    tpu.vector_store %arg8[%c17_34, %c0_35], %1 {strides = array<i32>} : memref<36x128xf32, #tpu.memory_space<vmem>>, vector<1x128xf32>,
    %c18_36 = arith.constant 18 : index
    %c0_37 = arith.constant 0 : index
    %42 = vector.load %arg8[%c18_36, %c0_37] : memref<36x128xf32, #tpu.memory_space<vmem>>, vector<1x128xf32>
    tpu.vector_store %arg8[%c18_36, %c0_37], %1 {strides = array<i32>} : memref<36x128xf32, #tpu.memory_space<vmem>>, vector<1x128xf32>,
    %43 = vector.extract_strided_slice %37 {offsets = [18, 0], sizes = [16, 128], strides = [1, 1]} : vector<34x128xf32> to vector<16x128xf32>
    %c19_38 = arith.constant 19 : index
    %c0_39 = arith.constant 0 : index
    %44 = vector.load %arg8[%c19_38, %c0_39] : memref<36x128xf32, #tpu.memory_space<vmem>>, vector<16x128xf32>
    tpu.vector_store %arg8[%c19_38, %c0_39], %43 {strides = array<i32>} : memref<36x128xf32, #tpu.memory_space<vmem>>, vector<16x128xf32>,
    %c35_40 = arith.constant 35 : index
    %c0_41 = arith.constant 0 : index
    %45 = vector.load %arg8[%c35_40, %c0_41] : memref<36x128xf32, #tpu.memory_space<vmem>>, vector<1x128xf32>
    tpu.vector_store %arg8[%c35_40, %c0_41], %1 {strides = array<i32>} : memref<36x128xf32, #tpu.memory_space<vmem>>, vector<1x128xf32>,
    %c0_42 = arith.constant 0 : index
    %c0_43 = arith.constant 0 : index
    %46 = vector.load %arg8[%c0_42, %c0_43] : memref<36x128xf32, #tpu.memory_space<vmem>>, vector<36x128xf32>
    %47 = arith.truncf %46 : vector<36x128xf32> to vector<36x128xbf16>
    %c0_44 = arith.constant 0 : index
    %c0_45 = arith.constant 0 : index
    %48 = vector.load %arg5[%c0_44, %c0_45] : memref<1x128xf32, #tpu.memory_space<vmem>>, vector<1x128xf32>
    %49 = vector.shape_cast %48 : vector<1x128xf32> to vector<128xf32>
    %50 = vector.shape_cast %49 : vector<128xf32> to vector<1x128xf32>
    %51 = vector.broadcast %50 : vector<1x128xf32> to vector<34x128xf32>
    %52 = vector.extract_strided_slice %47 {offsets = [0, 0], sizes = [34, 128], strides = [1, 1]} : vector<36x128xbf16> to vector<34x128xbf16>
    %c0_46 = arith.constant 0 : index
    %c0_47 = arith.constant 0 : index
    %c0_48 = arith.constant 0 : index
    %53 = vector.load %arg4[%c0_46, %c0_47, %c0_48] : memref<3x128x128xbf16, #tpu.memory_space<vmem>>, vector<1x128x128xbf16>
    %54 = vector.shape_cast %53 : vector<1x128x128xbf16> to vector<128x128xbf16>
    %cst_49 = arith.constant dense<0.000000e+00> : vector<34x128xf32>
    %55 = tpu.matmul %52, %54, %cst_49 {dimension_numbers = #tpu.dot_dimension_numbers<[1], [0], [0], [1], [0, 0, 1, 1], [], []>} : vector<34x128xbf16>, vector<128x128xbf16>, vector<34x128xf32> -> vector<34x128xf32>
    %56 = arith.addf %51, %55 : vector<34x128xf32>
    %57 = vector.extract_strided_slice %47 {offsets = [1, 0], sizes = [34, 128], strides = [1, 1]} : vector<36x128xbf16> to vector<34x128xbf16>
    %c1_50 = arith.constant 1 : index
    %c0_51 = arith.constant 0 : index
    %c0_52 = arith.constant 0 : index
    %58 = vector.load %arg4[%c1_50, %c0_51, %c0_52] : memref<3x128x128xbf16, #tpu.memory_space<vmem>>, vector<1x128x128xbf16>
    %59 = vector.shape_cast %58 : vector<1x128x128xbf16> to vector<128x128xbf16>
    %cst_53 = arith.constant dense<0.000000e+00> : vector<34x128xf32>
    %60 = tpu.matmul %57, %59, %cst_53 {dimension_numbers = #tpu.dot_dimension_numbers<[1], [0], [0], [1], [0, 0, 1, 1], [], []>} : vector<34x128xbf16>, vector<128x128xbf16>, vector<34x128xf32> -> vector<34x128xf32>
    %61 = arith.addf %56, %60 : vector<34x128xf32>
    %62 = vector.extract_strided_slice %47 {offsets = [2, 0], sizes = [34, 128], strides = [1, 1]} : vector<36x128xbf16> to vector<34x128xbf16>
    %c2_54 = arith.constant 2 : index
    %c0_55 = arith.constant 0 : index
    %c0_56 = arith.constant 0 : index
    %63 = vector.load %arg4[%c2_54, %c0_55, %c0_56] : memref<3x128x128xbf16, #tpu.memory_space<vmem>>, vector<1x128x128xbf16>
    %64 = vector.shape_cast %63 : vector<1x128x128xbf16> to vector<128x128xbf16>
    %cst_57 = arith.constant dense<0.000000e+00> : vector<34x128xf32>
    %65 = tpu.matmul %62, %64, %cst_57 {dimension_numbers = #tpu.dot_dimension_numbers<[1], [0], [0], [1], [0, 0, 1, 1], [], []>} : vector<34x128xbf16>, vector<128x128xbf16>, vector<34x128xf32> -> vector<34x128xf32>
    %66 = arith.addf %61, %65 : vector<34x128xf32>
    %cst_58 = arith.constant 0.000000e+00 : f32
    %67 = vector.broadcast %cst_58 : f32 to vector<34x128xf32>
    %68 = arith.cmpf ogt, %66, %67 : vector<34x128xf32>
    %cst_59 = arith.constant 0.00999999977 : f32
    %69 = vector.broadcast %cst_59 : f32 to vector<34x128xf32>
    %70 = arith.mulf %69, %66 : vector<34x128xf32>
    %71 = arith.select %68, %66, %70 : vector<34x128xi1>, vector<34x128xf32>
    %72 = vector.extract_strided_slice %71 {offsets = [0, 0], sizes = [16, 128], strides = [1, 1]} : vector<34x128xf32> to vector<16x128xf32>
    %c0_60 = arith.constant 0 : index
    %c0_61 = arith.constant 0 : index
    %c0_62 = arith.constant 0 : index
    %73 = vector.load %arg6[%c0_60, %c0_61, %c0_62] : memref<2x16x128xf32, #tpu.memory_space<vmem>>, vector<1x16x128xf32>
    %74 = vector.shape_cast %73 : vector<1x16x128xf32> to vector<16x128xf32>
    %75 = vector.shape_cast %72 : vector<16x128xf32> to vector<1x16x128xf32>
    tpu.vector_store %arg6[%c0_60, %c0_61, %c0_62], %75 {strides = array<i32>} : memref<2x16x128xf32, #tpu.memory_space<vmem>>, vector<1x16x128xf32>,
    %76 = vector.extract_strided_slice %71 {offsets = [18, 0], sizes = [16, 128], strides = [1, 1]} : vector<34x128xf32> to vector<16x128xf32>
    %c1_63 = arith.constant 1 : index
    %c0_64 = arith.constant 0 : index
    %c0_65 = arith.constant 0 : index
    %77 = vector.load %arg6[%c1_63, %c0_64, %c0_65] : memref<2x16x128xf32, #tpu.memory_space<vmem>>, vector<1x16x128xf32>
    %78 = vector.shape_cast %77 : vector<1x16x128xf32> to vector<16x128xf32>
    %79 = vector.shape_cast %76 : vector<16x128xf32> to vector<1x16x128xf32>
    tpu.vector_store %arg6[%c1_63, %c0_64, %c0_65], %79 {strides = array<i32>} : memref<2x16x128xf32, #tpu.memory_space<vmem>>, vector<1x16x128xf32>,
    return
  }
  func.func @transform_0(%arg0: i32) -> (i32, i32, i32) {
    %c0_i32 = arith.constant 0 : i32
    %c0_i32_0 = arith.constant 0 : i32
    %c0_i32_1 = arith.constant 0 : i32
    return %arg0, %c0_i32, %c0_i32_0 : i32, i32, i32
  }
  func.func @transform_1(%arg0: i32) -> (i32, i32, i32) {
    %c0_i32 = arith.constant 0 : i32
    %c0_i32_0 = arith.constant 0 : i32
    %c0_i32_1 = arith.constant 0 : i32
    %c0_i32_2 = arith.constant 0 : i32
    return %c0_i32, %c0_i32_0, %c0_i32_1 : i32, i32, i32
  }
  func.func @transform_2(%arg0: i32) -> (i32, i32) {
    %c0_i32 = arith.constant 0 : i32
    %c0_i32_0 = arith.constant 0 : i32
    %c0_i32_1 = arith.constant 0 : i32
    return %c0_i32, %c0_i32_0 : i32, i32
  }
  func.func @transform_3(%arg0: i32) -> (i32, i32, i32) {
    %c0_i32 = arith.constant 0 : i32
    %c0_i32_0 = arith.constant 0 : i32
    %c0_i32_1 = arith.constant 0 : i32
    %c0_i32_2 = arith.constant 0 : i32
    return %c0_i32, %c0_i32_0, %c0_i32_1 : i32, i32, i32
  }
  func.func @transform_4(%arg0: i32) -> (i32, i32) {
    %c0_i32 = arith.constant 0 : i32
    %c0_i32_0 = arith.constant 0 : i32
    %c0_i32_1 = arith.constant 0 : i32
    return %c0_i32, %c0_i32_0 : i32, i32
  }
  func.func @transform_5(%arg0: i32) -> (i32, i32, i32) {
    %c0_i32 = arith.constant 0 : i32
    %c0_i32_0 = arith.constant 0 : i32
    %c0_i32_1 = arith.constant 0 : i32
    return %arg0, %c0_i32, %c0_i32_0 : i32, i32, i32
  }
}

</mosaic_0001>

<llo_original>
// kernel: conv_block_packed.1
$region0: #{conv_block_packed.1}
  #allocation0 [shape = 'u32[]', space=smem, size = 0x4, offset = 0x4, fixed_abs, tag = 'smem constant byte address 0x4 - core index']
  #allocation1 [shape = 'u32[72,128]{1,0:T(1,128)}', space=vmem, size = 0x9000, scoped, tag = 'internal scratch']
  #allocation2 [shape = 'f32[36,64]{1,0:T(8,128)}', space=vmem, size = 0x5000, scoped, tag = 'scratch operand']
  #allocation3 [shape = 'f32[36,128]{1,0:T(8,128)}', space=vmem, size = 0x5000, scoped, tag = 'scratch operand']
  %s0 = inlined_call_operand.hbm [shape: f32[4,16,64], index: 0, kind: input, shape index: {}]
  %s1 = inlined_call_operand.hbm [shape: bf16[3,64,128], index: 1, kind: input, shape index: {}]
  %s2 = inlined_call_operand.vmem [shape: f32[1,128], index: 2, kind: input, shape index: {}]
  %s3 = inlined_call_operand.hbm [shape: bf16[3,128,128], index: 3, kind: input, shape index: {}]
  %s4 = inlined_call_operand.vmem [shape: f32[1,128], index: 4, kind: input, shape index: {}]
  %s5 = inlined_call_operand.hbm [shape: f32[4,16,128], index: 5, kind: output, shape index: {}]
  %s6 = sld [smem:[#allocation0]]
  $region65: #{conv_block_packed.1} parent=0
    _
  %s8 = ssub.s32 1, %s6
  %s9 = scalar_select 0, %s8, %s6
  $region1: #{conv_block_packed.1} parent=0
    #allocation4 [shape = 'u8[32768]{0}', space=vmem, size = 0x8000, scoped, tag = 'input window, operand 0']
    #allocation5 [shape = 's32[2]{0}', space=sflag, size = 0x8, scoped, tag = 'scoped memory for conv_block_packed.1']
    #allocation6 [shape = 's32[2]{0}', space=sflag, size = 0x8, scoped, tag = 'scoped memory for conv_block_packed.1']
    #allocation7 [shape = 'u8[49152]{0}', space=vmem, size = 0xc000, scoped, tag = 'input window, operand 1, single buffered']
    #allocation8 [shape = 's32[1]{0}', space=sflag, size = 0x4, scoped, tag = 'scoped memory for conv_block_packed.1']
    #allocation9 [shape = 'u8[98304]{0}', space=vmem, size = 0x18000, scoped, tag = 'input window, operand 3, single buffered']
    #allocation10 [shape = 'u8[32768]{0}', space=vmem, size = 0x8000, scoped, tag = 'output window, operand 0']
    %10 = vsyncpa [#allocation5], 0
    %s11 = scalar_lea.sflag [#allocation5], 1
    %12 = vsyncpa %s11, 0
    %13 = vsyncpa [#allocation8], 0
    %14 = vsyncpa [#allocation6], 0
    %s15 = scalar_lea.sflag [#allocation6], 1
    %16 = vsyncpa %s15, 0
    loop: start=0, step=1, limit=4
    $region2: #{conv_block_packed.1} parent=1 // loop_pre_header
      _
    $region3: #{conv_block_packed.1} parent=1 // loop_header
      %s18 = sphi 0, %s22
      %p19 = scmp.ge.s32.totalorder %s18, 4
      %s28 = sphi 0, %s30
      %s31 = sphi 0, %s28
      %s32 = sphi 0, %s31
      %s48 = sphi 0, %s32
      %s52 = sphi 0, %s52
      %s54 = sphi 0, %s52
      %s55 = sphi 0, %s54
      %s69 = sphi 0, %s55
      %s73 = sphi 0, %s73
      %s75 = sphi 0, %s73
      %s76 = sphi 0, %s75
      %s90 = sphi 0, %s76
      %s94 = sphi 0, %s94
      %s96 = sphi 0, %s94
      %s97 = sphi 0, %s96
      %s111 = sphi 0, %s97
      %s115 = sphi 0, %s115
      %s117 = sphi 0, %s115
      %s118 = sphi 0, %s117
      %s132 = sphi 0, %s118
      %s138 = sphi 0, %s140
      %s141 = sphi 0, %s138
      %s142 = sphi 0, %s141
      %s158 = sphi 0, %s142
    $region4: #{conv_block_packed.1} parent=1 // loop_header_branch
      %21 = sbr.rel (%p19) target = $region8
    $region5: #{conv_block_packed.1} parent=1 // loop_body
      %s23 = ssub.s32 %s18, 1
      %s24 = ssub.s32 %s18, 2
      %s25 = sadd.s32 %s18, 1
      %s26 = ssub.s32 %s18, %s25
      %p27 = scmp.eq.s32.totalorder %s26, 0
      %s29 = sadd.s32 %s28, 1
      %s30 = scalar_select %p27, %s28, %s29
      %p33 = pneg %p27
      %p34 = scmp.eq.s32.totalorder %s18, 1
      %p35 = por %p33, %p34
      %p36 = scmp.ne.s32.totalorder %s28, %s31
      %p37 = scmp.eq.s32.totalorder %s18, 0
      %p38 = por %p36, %p37
      %p39 = scmp.ne.s32.totalorder %s28, %s31
      %p40 = scmp.eq.s32.totalorder %s23, 1
      %p41 = por %p39, %p40
      %p42 = scmp.ne.s32.totalorder %s31, %s32
      %p43 = scmp.eq.s32.totalorder %s23, 0
      %p44 = por %p42, %p43
      %p45 = scmp.ne.s32.totalorder %s31, %s32
      %p46 = scmp.eq.s32.totalorder %s24, 1
      %p47 = por %p45, %p46
      %p49 = scmp.ne.s32.totalorder %s32, %s48
      %p50 = scmp.eq.s32.totalorder %s24, 0
      %p51 = por %p49, %p50
      %s53 = sadd.s32 %s52, 1
      %p56 = scmp.eq.s32.totalorder %s18, 1
      %p57 = scmp.ne.s32.totalorder %s52, %s54
      %p58 = scmp.eq.s32.totalorder %s18, 0
      %p59 = por %p57, %p58
      %p60 = scmp.ne.s32.totalorder %s52, %s54
      %p61 = scmp.eq.s32.totalorder %s23, 1
      %p62 = por %p60, %p61
      %p63 = scmp.ne.s32.totalorder %s54, %s55
      %p64 = scmp.eq.s32.totalorder %s23, 0
      %p65 = por %p63, %p64
      %p66 = scmp.ne.s32.totalorder %s54, %s55
      %p67 = scmp.eq.s32.totalorder %s24, 1
      %p68 = por %p66, %p67
      %p70 = scmp.ne.s32.totalorder %s55, %s69
      %p71 = scmp.eq.s32.totalorder %s24, 0
      %p72 = por %p70, %p71
      %s74 = sadd.s32 %s73, 1
      %p77 = scmp.eq.s32.totalorder %s18, 1
      %p78 = scmp.ne.s32.totalorder %s73, %s75
      %p79 = scmp.eq.s32.totalorder %s18, 0
      %p80 = por %p78, %p79
      %p81 = scmp.ne.s32.totalorder %s73, %s75
      %p82 = scmp.eq.s32.totalorder %s23, 1
      %p83 = por %p81, %p82
      %p84 = scmp.ne.s32.totalorder %s75, %s76
      %p85 = scmp.eq.s32.totalorder %s23, 0
      %p86 = por %p84, %p85
      %p87 = scmp.ne.s32.totalorder %s75, %s76
      %p88 = scmp.eq.s32.totalorder %s24, 1
      %p89 = por %p87, %p88
      %p91 = scmp.ne.s32.totalorder %s76, %s90
      %p92 = scmp.eq.s32.totalorder %s24, 0
      %p93 = por %p91, %p92
      %s95 = sadd.s32 %s94, 1
      %p98 = scmp.eq.s32.totalorder %s18, 1
      %p99 = scmp.ne.s32.totalorder %s94, %s96
      %p100 = scmp.eq.s32.totalorder %s18, 0
      %p101 = por %p99, %p100
      %p102 = scmp.ne.s32.totalorder %s94, %s96
      %p103 = scmp.eq.s32.totalorder %s23, 1
      %p104 = por %p102, %p103
      %p105 = scmp.ne.s32.totalorder %s96, %s97
      %p106 = scmp.eq.s32.totalorder %s23, 0
      %p107 = por %p105, %p106
      %p108 = scmp.ne.s32.totalorder %s96, %s97
      %p109 = scmp.eq.s32.totalorder %s24, 1
      %p110 = por %p108, %p109
      %p112 = scmp.ne.s32.totalorder %s97, %s111
      %p113 = scmp.eq.s32.totalorder %s24, 0
      %p114 = por %p112, %p113
      %s116 = sadd.s32 %s115, 1
      %p119 = scmp.eq.s32.totalorder %s18, 1
      %p120 = scmp.ne.s32.totalorder %s115, %s117
      %p121 = scmp.eq.s32.totalorder %s18, 0
      %p122 = por %p120, %p121
      %p123 = scmp.ne.s32.totalorder %s115, %s117
      %p124 = scmp.eq.s32.totalorder %s23, 1
      %p125 = por %p123, %p124
      %p126 = scmp.ne.s32.totalorder %s117, %s118
      %p127 = scmp.eq.s32.totalorder %s23, 0
      %p128 = por %p126, %p127
      %p129 = scmp.ne.s32.totalorder %s117, %s118
      %p130 = scmp.eq.s32.totalorder %s24, 1
      %p131 = por %p129, %p130
      %p133 = scmp.ne.s32.totalorder %s118, %s132
      %p134 = scmp.eq.s32.totalorder %s24, 0
      %p135 = por %p133, %p134
      %s136 = ssub.s32 %s18, %s25
      %p137 = scmp.eq.s32.totalorder %s136, 0
      %s139 = sadd.s32 %s138, 1
      %s140 = scalar_select %p137, %s138, %s139
      %p143 = pneg %p137
      %p144 = scmp.eq.s32.totalorder %s18, 1
      %p145 = por %p143, %p144
      %p146 = scmp.ne.s32.totalorder %s138, %s141
      %p147 = scmp.eq.s32.totalorder %s18, 0
      %p148 = por %p146, %p147
      %p149 = scmp.ne.s32.totalorder %s138, %s141
      %p150 = scmp.eq.s32.totalorder %s23, 1
      %p151 = por %p149, %p150
      %p152 = scmp.ne.s32.totalorder %s141, %s142
      %p153 = scmp.eq.s32.totalorder %s23, 0
      %p154 = por %p152, %p153
      %p155 = scmp.ne.s32.totalorder %s141, %s142
      %p156 = scmp.eq.s32.totalorder %s24, 1
      %p157 = por %p155, %p156
      %p159 = scmp.ne.s32.totalorder %s142, %s158
      %p160 = scmp.eq.s32.totalorder %s24, 0
      %p161 = por %p159, %p160
      %p162 = scmp.le.s32.totalorder 1, %s18
      %p163 = scmp.lt.s32.totalorder %s18, 3
      %p164 = pnand %p162, %p163
      %p165 = pneg %p164
      // Predicated region
      $region9: #{conv_block_packed.1} parent=5 // pred_check
        _
      $region10: #{conv_block_packed.1} parent=5 // pred_check_branch
        %167 = sbr.rel (%p164) target = $region12
      $region11: #{conv_block_packed.1} parent=5 // pred_region
        %s168 = ssub.s32 %s18, 1
        // Predicated region
        $region13: #{conv_block_packed.1} parent=11 // pred_check
          %p169 = pneg %p65
        $region14: #{conv_block_packed.1} parent=11 // pred_check_branch
          %171 = sbr.rel (%p169) target = $region16
        $region15: #{conv_block_packed.1} parent=11 // pred_region
          %173 = vsyncadd [#allocation8], 0
          %s174 = sshll.u32 %s1, 4
          %s175 = int_to_ptr.hbm [resolvable:$true] %s174
          %s176 = sshll.u32 [#allocation7], 4
          %s177 = int_to_ptr.vmem [resolvable:$true] %s176
          %182 = dma.hbm_to_vmem [thread:$0]  %s175, 1536, %s177, [#allocation8], 64, 64, 4
        $region16: #{conv_block_packed.1} parent=11 // pred_fallthru
          _
        // Predicated region
        $region17: #{conv_block_packed.1} parent=11 // pred_check
          %p183 = pneg %p86
        $region18: #{conv_block_packed.1} parent=11 // pred_check_branch
          %185 = sbr.rel (%p183) target = $region20
        $region19: #{conv_block_packed.1} parent=11 // pred_region
          _
        $region20: #{conv_block_packed.1} parent=11 // pred_fallthru
          _
        // Predicated region
        $region21: #{conv_block_packed.1} parent=11 // pred_check
          %p186 = pneg %p107
        $region22: #{conv_block_packed.1} parent=11 // pred_check_branch
          %188 = sbr.rel (%p186) target = $region24
        $region23: #{conv_block_packed.1} parent=11 // pred_region
          %190 = vsyncadd [#allocation8], 0
          %s191 = sshll.u32 %s3, 4
          %s192 = int_to_ptr.hbm [resolvable:$true] %s191
          %s193 = sshll.u32 [#allocation9], 4
          %s194 = int_to_ptr.vmem [resolvable:$true] %s193
          %199 = dma.hbm_to_vmem [thread:$0]  %s192, 3072, %s194, [#allocation8], 64, 64, 4
        $region24: #{conv_block_packed.1} parent=11 // pred_fallthru
          _
        // Predicated region
        $region25: #{conv_block_packed.1} parent=11 // pred_check
          %p200 = pneg %p128
        $region26: #{conv_block_packed.1} parent=11 // pred_check_branch
          %202 = sbr.rel (%p200) target = $region28
        $region27: #{conv_block_packed.1} parent=11 // pred_region
          _
        $region28: #{conv_block_packed.1} parent=11 // pred_fallthru
          _
      $region12: #{conv_block_packed.1} parent=5 // pred_fallthru
        _
      %p203 = scmp.lt.s32.totalorder %s18, 2
      // Predicated region
      $region29: #{conv_block_packed.1} parent=5 // pred_check
        %p204 = pneg %p203
      $region30: #{conv_block_packed.1} parent=5 // pred_check_branch
        %206 = sbr.rel (%p204) target = $region32
      $region31: #{conv_block_packed.1} parent=5 // pred_region
        // Predicated region
        $region33: #{conv_block_packed.1} parent=31 // pred_check
          %p207 = pneg %p38
        $region34: #{conv_block_packed.1} parent=31 // pred_check_branch
          %209 = sbr.rel (%p207) target = $region36
        $region35: #{conv_block_packed.1} parent=31 // pred_region
          %s210 = sand.u32 %s28, 1
          %s211 = scalar_lea.sflag [#allocation5], %s210
          %s212 = sand.u32 %s28, 1
          %s213 = smul.addr %s212, 32
          %s214 = scalar_lea.vmem [#allocation4], %s213
          %s215 = smul.u32 2, %s18
          %217 = vsyncadd %s211, 0
          %s218 = smul.addr %s215, 2
          %s219 = smul.addr %s218, 8
          %s220 = scalar_lea.hbm %s0, %s219
          %s221 = sshll.u32 %s220, 4
          %s222 = int_to_ptr.hbm [resolvable:$true] %s221
          %s223 = sshll.u32 %s214, 4
          %s224 = int_to_ptr.vmem [resolvable:$true] %s223
          %229 = dma.hbm_to_vmem [thread:$0]  %s222, 512, %s224, %s211, 128, 128, 8
        $region36: #{conv_block_packed.1} parent=31 // pred_fallthru
          _
      $region32: #{conv_block_packed.1} parent=5 // pred_fallthru
        _
      %p230 = scmp.le.s32.totalorder 1, %s18
      %p231 = scmp.lt.s32.totalorder %s18, 3
      %p232 = pnand %p230, %p231
      %p233 = pneg %p232
      // Predicated region
      $region37: #{conv_block_packed.1} parent=5 // pred_check
        _
      $region38: #{conv_block_packed.1} parent=5 // pred_check_branch
        %235 = sbr.rel (%p232) target = $region40
      $region39: #{conv_block_packed.1} parent=5 // pred_region
        %s236 = ssub.s32 %s18, 1
        %s237 = sand.u32 %s31, 1
        %s238 = scalar_lea.sflag [#allocation5], %s237
        %s239 = sand.u32 %s31, 1
        %s240 = smul.addr %s239, 32
        %s241 = scalar_lea.vmem [#allocation4], %s240
        // Predicated region
        $region41: #{conv_block_packed.1} parent=39 // pred_check
          %p242 = pneg %p44
        $region42: #{conv_block_packed.1} parent=39 // pred_check_branch
          %244 = sbr.rel (%p242) target = $region44
        $region43: #{conv_block_packed.1} parent=39 // pred_region
          %246 = dma.done %s238, 512
        $region44: #{conv_block_packed.1} parent=39 // pred_fallthru
          _
        // Predicated region
        $region45: #{conv_block_packed.1} parent=39 // pred_check
          %p247 = pneg %p65
        $region46: #{conv_block_packed.1} parent=39 // pred_check_branch
          %249 = sbr.rel (%p247) target = $region48
        $region47: #{conv_block_packed.1} parent=39 // pred_region
          %251 = dma.done [#allocation8], 1536
        $region48: #{conv_block_packed.1} parent=39 // pred_fallthru
          _
        // Predicated region
        $region49: #{conv_block_packed.1} parent=39 // pred_check
          %p252 = pneg %p107
        $region50: #{conv_block_packed.1} parent=39 // pred_check_branch
          %254 = sbr.rel (%p252) target = $region52
        $region51: #{conv_block_packed.1} parent=39 // pred_region
          %256 = dma.done [#allocation8], 3072
        $region52: #{conv_block_packed.1} parent=39 // pred_fallthru
          _
        %s257 = sand.u32 %s31, 1
        %s258 = scalar_lea.sflag [#allocation5], %s257
        %s259 = sand.u32 %s31, 1
        %s260 = smul.addr %s259, 32
        %s261 = scalar_lea.vmem [#allocation4], %s260
        %p262 = pneg %p44
        %p263 = pneg %p41
        %p264 = pneg %p65
        %p265 = pneg %p62
        %p266 = pneg %p86
        %p267 = pneg %p83
        %p268 = pneg %p107
        %p269 = pneg %p104
        %p270 = pneg %p128
        %p271 = pneg %p125
        %p272 = pneg %p154
        %p273 = pneg %p151
        %s274 = sand.u32 %s141, 1
        %s275 = scalar_lea.sflag [#allocation6], %s274
        %s276 = sand.u32 %s141, 1
        %s277 = smul.addr %s276, 32
        %s278 = scalar_lea.vmem [#allocation10], %s277
        %s279 = smul.u32 2, %s23
        %s280 = smul.u32 2, %s23
        %vm282 = vcmask 516096
        %283 = vst.msk [vmem:[#allocation2] sm:$0x1] %vm282, 0.0
        %v284 = vld [vmem:[%s241] sm:$0xff]
        %v285 = vld [vmem:[%s241 + $0x8] sm:$0xff]
        %vm286 = vcmask 523264
        %287 = vst.msk [vmem:[#allocation2 + $0x1] sm:$0xff] %vm286, %v284
        %288 = vst.msk [vmem:[#allocation2 + $0x9] sm:$0xff] %vm286, %v285
        %289 = vst.msk [vmem:[#allocation2 + $0x11] sm:$0x1] %vm282, 0.0
        %290 = vst.msk [vmem:[#allocation2 + $0x12] sm:$0x1] %vm282, 0.0
        %s291 = scalar_lea.vmem %s241, 16 [#allocation4]
        %v292 = vld [vmem:[%s291] sm:$0xff]
        %v293 = vld [vmem:[%s291 + $0x8] sm:$0xff]
        %294 = vst.msk [vmem:[#allocation2 + $0x13] sm:$0xff] %vm286, %v292
        %295 = vst.msk [vmem:[#allocation2 + $0x1b] sm:$0xff] %vm286, %v293
        %296 = vst.msk [vmem:[#allocation2 + $0x23] sm:$0x1] %vm282, 0.0
        %v297 = vld [vmem:[#allocation2] sm:$0xff]
        %v298 = vld [vmem:[#allocation2 + $0x8] sm:$0xff]
        %v299 = vld [vmem:[#allocation2 + $0x10] sm:$0xff]
        %v300 = vld [vmem:[#allocation2 + $0x18] sm:$0xff]
        %v301 = vld [vmem:[#allocation2 + $0x20] sm:$0xf]
        %v302 = vpack.c.bf16 %v297, %v297
        %v303 = vpack.c.bf16 %v298, %v298
        %v304 = vpack.c.bf16 %v299, %v299
        %v305 = vpack.c.bf16 %v300, %v300
        %v306 = vpack.c.bf16 %v301, %v301
        %v307 = vld [vmem:[%s2] sm:$0x1]
        %v309 = vperm.slane %v307, 0
        %v311 = vld [vmem:[#allocation7] sm:$0xf]
        %v312 = vld [vmem:[#allocation7 + $0x4] sm:$0xf]
        %v313 = vld [vmem:[#allocation7 + $0x8] sm:$0xf]
        %v314 = vld [vmem:[#allocation7 + $0xc] sm:$0xf]
        %v315 = vld [vmem:[#allocation7 + $0x10] sm:$0xf]
        %v316 = vld [vmem:[#allocation7 + $0x14] sm:$0xf]
        %v317 = vld [vmem:[#allocation7 + $0x18] sm:$0xf]
        %v318 = vld [vmem:[#allocation7 + $0x1c] sm:$0xf]
        %v324 = vunpack.c.l.b16 %v302
        %v325 = vunpack.c.l.b16 %v303
        %v326 = vunpack.c.l.b16 %v304
        %v327 = vunpack.c.l.b16 %v305
        %v328 = vunpack.c.l.b16 %v306
        %v329 = vpack.c.b16 %v325, %v324
        %v330 = vpack.c.b16 %v327, %v326
        %v331 = vpack.c.b16 %v328, %v328
        %v340 = vunpack.c.l.b16 %v311
        %v341 = vunpack.c.l.b16 %v312
        %v342 = vunpack.c.l.b16 %v313
        %v343 = vunpack.c.l.b16 %v314
        %v344 = vunpack.c.l.b16 %v315
        %v345 = vunpack.c.l.b16 %v316
        %v346 = vunpack.c.l.b16 %v317
        %v347 = vunpack.c.l.b16 %v318
        %v348 = vpack.c.b16 %v341, %v340
        %v349 = vpack.c.b16 %v343, %v342
        %v350 = vpack.c.b16 %v345, %v344
        %v351 = vpack.c.b16 %v347, %v346
        %v357 = vsel %vm286, %v329, 0
        %v360 = vsel %vm286, %v330, 0
        %v363 = vsel %vm286, %v331, 0
        %365 = vmatpush.bf16.msra.mxu0 0
        %366 = vmatpush.bf16.msra.mxu0 0
        %367 = vmatpush.bf16.msra.mxu0 0
        %368 = vmatpush.bf16.msra.mxu0 0
        %369 = vmatpush.bf16.msra.mxu0 %v351
        %370 = vmatpush.bf16.msra.mxu0 %v350
        %371 = vmatpush.bf16.msra.mxu0 %v349
        %372 = vmatpush.bf16.msra.mxu0 %v348
        %373 = vmatmul.bf16.gmra.mxu0 %v357
        %v374 = vpop.f32.mrf.mxu0
        %v375 = vadd.f32 0.0, %v374
        %v376 = vpop.f32.mrf.mxu0
        %v377 = vadd.f32 0.0, %v376
        %378 = vmatmul.bf16.gmra.mxu0 %v360
        %v379 = vpop.f32.mrf.mxu0
        %v380 = vadd.f32 0.0, %v379
        %v381 = vpop.f32.mrf.mxu0
        %v382 = vadd.f32 0.0, %v381
        %383 = vmatmul.bf16.gmra.mxu0 %v363
        %v384 = vpop.f32.mrf.mxu0
        %v385 = vadd.f32 0.0, %v384
        %v386 = vpop.f32.mrf.mxu0
        %387 = vdwg.mxu0
        %v388 = vadd.f32 %v309, %v375
        %v389 = vadd.f32 %v309, %v377
        %v390 = vadd.f32 %v309, %v380
        %v391 = vadd.f32 %v309, %v382
        %v392 = vadd.f32 %v309, %v385
        %s393 = scalar_lea.vmem [#allocation7], 32
        %v394 = vld [vmem:[%s393] sm:$0xf]
        %v395 = vld [vmem:[%s393 + $0x4] sm:$0xf]
        %v396 = vld [vmem:[%s393 + $0x8] sm:$0xf]
        %v397 = vld [vmem:[%s393 + $0xc] sm:$0xf]
        %v398 = vld [vmem:[%s393 + $0x10] sm:$0xf]
        %v399 = vld [vmem:[%s393 + $0x14] sm:$0xf]
        %v400 = vld [vmem:[%s393 + $0x18] sm:$0xf]
        %v401 = vld [vmem:[%s393 + $0x1c] sm:$0xf]
        %vm402 = vsmask.f32 7424
        %v403 = vshrl.u32 %v329, 16
        %v405 = vshll.u32 %v329, 16
        %v407 = vrot.slane %v405, 1
        %v408 = vor.u32 %v403, %v407
        %v409 = vshll.u32 %v330, 16
        %v411 = vrot.slane %v409, 1
        %v412 = vsel %vm402, %v408, %v411
        %v413 = vshrl.u32 %v330, 16
        %v415 = vor.u32 %v413, %v411
        %v416 = vshll.u32 %v331, 16
        %v418 = vrot.slane %v416, 1
        %v419 = vsel %vm402, %v415, %v418
        %v420 = vshrl.u32 %v331, 16
        %v422 = vor.u32 %v420, %v418
        %v431 = vunpack.c.l.b16 %v394
        %v432 = vunpack.c.l.b16 %v395
        %v433 = vunpack.c.l.b16 %v396
        %v434 = vunpack.c.l.b16 %v397
        %v435 = vunpack.c.l.b16 %v398
        %v436 = vunpack.c.l.b16 %v399
        %v437 = vunpack.c.l.b16 %v400
        %v438 = vunpack.c.l.b16 %v401
        %v439 = vpack.c.b16 %v432, %v431
        %v440 = vpack.c.b16 %v434, %v433
        %v441 = vpack.c.b16 %v436, %v435
        %v442 = vpack.c.b16 %v438, %v437
        %v448 = vsel %vm286, %v412, 0
        %v451 = vsel %vm286, %v419, 0
        %v454 = vsel %vm286, %v422, 0
        %456 = vmatpush.bf16.msra.mxu0 0
        %457 = vmatpush.bf16.msra.mxu0 0
        %458 = vmatpush.bf16.msra.mxu0 0
        %459 = vmatpush.bf16.msra.mxu0 0
        %460 = vmatpush.bf16.msra.mxu0 %v442
        %461 = vmatpush.bf16.msra.mxu0 %v441
        %462 = vmatpush.bf16.msra.mxu0 %v440
        %463 = vmatpush.bf16.msra.mxu0 %v439
        %464 = vmatmul.bf16.gmra.mxu0 %v448
        %v465 = vpop.f32.mrf.mxu0
        %v466 = vadd.f32 0.0, %v465
        %v467 = vpop.f32.mrf.mxu0
        %v468 = vadd.f32 0.0, %v467
        %469 = vmatmul.bf16.gmra.mxu0 %v451
        %v470 = vpop.f32.mrf.mxu0
        %v471 = vadd.f32 0.0, %v470
        %v472 = vpop.f32.mrf.mxu0
        %v473 = vadd.f32 0.0, %v472
        %474 = vmatmul.bf16.gmra.mxu0 %v454
        %v475 = vpop.f32.mrf.mxu0
        %v476 = vadd.f32 0.0, %v475
        %v477 = vpop.f32.mrf.mxu0
        %478 = vdwg.mxu0
        %v479 = vadd.f32 %v388, %v466
        %v480 = vadd.f32 %v389, %v468
        %v481 = vadd.f32 %v390, %v471
        %v482 = vadd.f32 %v391, %v473
        %v483 = vadd.f32 %v392, %v476
        %s484 = scalar_lea.vmem [#allocation7], 64
        %v485 = vld [vmem:[%s484] sm:$0xf]
        %v486 = vld [vmem:[%s484 + $0x4] sm:$0xf]
        %v487 = vld [vmem:[%s484 + $0x8] sm:$0xf]
        %v488 = vld [vmem:[%s484 + $0xc] sm:$0xf]
        %v489 = vld [vmem:[%s484 + $0x10] sm:$0xf]
        %v490 = vld [vmem:[%s484 + $0x14] sm:$0xf]
        %v491 = vld [vmem:[%s484 + $0x18] sm:$0xf]
        %v492 = vld [vmem:[%s484 + $0x1c] sm:$0xf]
        %vm493 = vcmask 1046528
        %v494 = vrot.slane %v329, 1
        %v495 = vrot.slane %v330, 1
        %v496 = vsel %vm493, %v494, %v495
        %v497 = vrot.slane %v331, 1
        %v498 = vsel %vm493, %v495, %v497
        %v507 = vunpack.c.l.b16 %v485
        %v508 = vunpack.c.l.b16 %v486
        %v509 = vunpack.c.l.b16 %v487
        %v510 = vunpack.c.l.b16 %v488
        %v511 = vunpack.c.l.b16 %v489
        %v512 = vunpack.c.l.b16 %v490
        %v513 = vunpack.c.l.b16 %v491
        %v514 = vunpack.c.l.b16 %v492
        %v515 = vpack.c.b16 %v508, %v507
        %v516 = vpack.c.b16 %v510, %v509
        %v517 = vpack.c.b16 %v512, %v511
        %v518 = vpack.c.b16 %v514, %v513
        %v524 = vsel %vm286, %v496, 0
        %v527 = vsel %vm286, %v498, 0
        %v530 = vsel %vm286, %v497, 0
        %532 = vmatpush.bf16.msra.mxu0 0
        %533 = vmatpush.bf16.msra.mxu0 0
        %534 = vmatpush.bf16.msra.mxu0 0
        %535 = vmatpush.bf16.msra.mxu0 0
        %536 = vmatpush.bf16.msra.mxu0 %v518
        %537 = vmatpush.bf16.msra.mxu0 %v517
        %538 = vmatpush.bf16.msra.mxu0 %v516
        %539 = vmatpush.bf16.msra.mxu0 %v515
        %540 = vmatmul.bf16.gmra.mxu0 %v524
        %v541 = vpop.f32.mrf.mxu0
        %v542 = vadd.f32 0.0, %v541
        %v543 = vpop.f32.mrf.mxu0
        %v544 = vadd.f32 0.0, %v543
        %545 = vmatmul.bf16.gmra.mxu0 %v527
        %v546 = vpop.f32.mrf.mxu0
        %v547 = vadd.f32 0.0, %v546
        %v548 = vpop.f32.mrf.mxu0
        %v549 = vadd.f32 0.0, %v548
        %550 = vmatmul.bf16.gmra.mxu0 %v530
        %v551 = vpop.f32.mrf.mxu0
        %v552 = vadd.f32 0.0, %v551
        %v553 = vpop.f32.mrf.mxu0
        %554 = vdwg.mxu0
        %v555 = vadd.f32 %v479, %v542
        %v556 = vadd.f32 %v480, %v544
        %v557 = vadd.f32 %v481, %v547
        %v558 = vadd.f32 %v482, %v549
        %v559 = vadd.f32 %v483, %v552
        %vm560 = vcmp.gt.f32.partialorder %v555, 0.0
        %vm561 = vcmp.gt.f32.partialorder %v556, 0.0
        %vm562 = vcmp.gt.f32.partialorder %v557, 0.0
        %vm563 = vcmp.gt.f32.partialorder %v558, 0.0
        %vm564 = vcmp.gt.f32.partialorder %v559, 0.0
        %v565 = vmul.f32 %v555, 0.01
        %v566 = vmul.f32 %v556, 0.01
        %v567 = vmul.f32 %v557, 0.01
        %v568 = vmul.f32 %v558, 0.01
        %v569 = vmul.f32 %v559, 0.01
        %v570 = vsel %vm560, %v555, %v565
        %v571 = vsel %vm561, %v556, %v566
        %v572 = vsel %vm562, %v557, %v567
        %v573 = vsel %vm563, %v558, %v568
        %v574 = vsel %vm564, %v559, %v569
        %575 = vst [vmem:[#allocation3] sm:$0x1] 0.0
        %576 = vst [vmem:[#allocation3 + $0x1] sm:$0xff] %v570
        %577 = vst [vmem:[#allocation3 + $0x9] sm:$0xff] %v571
        %578 = vst [vmem:[#allocation3 + $0x11] sm:$0x1] 0.0
        %579 = vst [vmem:[#allocation3 + $0x12] sm:$0x1] 0.0
        %580 = vst [vmem:[#allocation3 + $0x11] sm:$0xfc] %v572
        %581 = vst [vmem:[#allocation3 + $0x19] sm:$0xff] %v573
        %582 = vst [vmem:[#allocation3 + $0x21] sm:$0x3] %v574
        %583 = vst [vmem:[#allocation3 + $0x23] sm:$0x1] 0.0
        %v584 = vld [vmem:[#allocation3] sm:$0xff]
        %v585 = vld [vmem:[#allocation3 + $0x8] sm:$0xff]
        %v586 = vld [vmem:[#allocation3 + $0x10] sm:$0xff]
        %v587 = vld [vmem:[#allocation3 + $0x18] sm:$0xff]
        %v588 = vld [vmem:[#allocation3 + $0x20] sm:$0xf]
        %v589 = vpack.c.bf16 %v584, %v584
        %v590 = vpack.c.bf16 %v585, %v585
        %v591 = vpack.c.bf16 %v586, %v586
        %v592 = vpack.c.bf16 %v587, %v587
        %v593 = vpack.c.bf16 %v588, %v588
        %v594 = vld [vmem:[%s4] sm:$0x1]
        %v596 = vperm.slane %v594, 0
        %v598 = vld [vmem:[#allocation9] sm:$0xf]
        %v599 = vld [vmem:[#allocation9 + $0x4] sm:$0xf]
        %v600 = vld [vmem:[#allocation9 + $0x8] sm:$0xf]
        %v601 = vld [vmem:[#allocation9 + $0xc] sm:$0xf]
        %v602 = vld [vmem:[#allocation9 + $0x10] sm:$0xf]
        %v603 = vld [vmem:[#allocation9 + $0x14] sm:$0xf]
        %v604 = vld [vmem:[#allocation9 + $0x18] sm:$0xf]
        %v605 = vld [vmem:[#allocation9 + $0x1c] sm:$0xf]
        %v606 = vld [vmem:[#allocation9 + $0x20] sm:$0xf]
        %v607 = vld [vmem:[#allocation9 + $0x24] sm:$0xf]
        %v608 = vld [vmem:[#allocation9 + $0x28] sm:$0xf]
        %v609 = vld [vmem:[#allocation9 + $0x2c] sm:$0xf]
        %v610 = vld [vmem:[#allocation9 + $0x30] sm:$0xf]
        %v611 = vld [vmem:[#allocation9 + $0x34] sm:$0xf]
        %v612 = vld [vmem:[#allocation9 + $0x38] sm:$0xf]
        %v613 = vld [vmem:[#allocation9 + $0x3c] sm:$0xf]
        %v619 = vunpack.c.l.b16 %v589
        %v620 = vunpack.c.l.b16 %v590
        %v621 = vunpack.c.l.b16 %v591
        %v622 = vunpack.c.l.b16 %v592
        %v623 = vunpack.c.l.b16 %v593
        %v624 = vpack.c.b16 %v620, %v619
        %v625 = vpack.c.b16 %v622, %v621
        %v626 = vpack.c.b16 %v623, %v623
        %v646 = vunpack.c.l.b16 %v598
        %v647 = vunpack.c.l.b16 %v599
        %v648 = vunpack.c.l.b16 %v600
        %v649 = vunpack.c.l.b16 %v601
        %v650 = vunpack.c.l.b16 %v602
        %v651 = vunpack.c.l.b16 %v603
        %v652 = vunpack.c.l.b16 %v604
        %v653 = vunpack.c.l.b16 %v605
        %v654 = vunpack.c.l.b16 %v606
        %v655 = vunpack.c.l.b16 %v607
        %v656 = vunpack.c.l.b16 %v608
        %v657 = vunpack.c.l.b16 %v609
        %v658 = vunpack.c.l.b16 %v610
        %v659 = vunpack.c.l.b16 %v611
        %v660 = vunpack.c.l.b16 %v612
        %v661 = vunpack.c.l.b16 %v613
        %v662 = vpack.c.b16 %v647, %v646
        %v663 = vpack.c.b16 %v649, %v648
        %v664 = vpack.c.b16 %v651, %v650
        %v665 = vpack.c.b16 %v653, %v652
        %v666 = vpack.c.b16 %v655, %v654
        %v667 = vpack.c.b16 %v657, %v656
        %v668 = vpack.c.b16 %v659, %v658
        %v669 = vpack.c.b16 %v661, %v660
        %678 = vmatpush.bf16.msra.mxu0 %v669
        %679 = vmatpush.bf16.msra.mxu0 %v668
        %680 = vmatpush.bf16.msra.mxu0 %v667
        %681 = vmatpush.bf16.msra.mxu0 %v666
        %682 = vmatpush.bf16.msra.mxu0 %v665
        %683 = vmatpush.bf16.msra.mxu0 %v664
        %684 = vmatpush.bf16.msra.mxu0 %v663
        %685 = vmatpush.bf16.msra.mxu0 %v662
        %686 = vmatmul.bf16.gmra.mxu0 %v624
        %v687 = vpop.f32.mrf.mxu0
        %v688 = vadd.f32 0.0, %v687
        %v689 = vpop.f32.mrf.mxu0
        %v690 = vadd.f32 0.0, %v689
        %691 = vmatmul.bf16.gmra.mxu0 %v625
        %v692 = vpop.f32.mrf.mxu0
        %v693 = vadd.f32 0.0, %v692
        %v694 = vpop.f32.mrf.mxu0
        %v695 = vadd.f32 0.0, %v694
        %696 = vmatmul.bf16.gmra.mxu0 %v626
        %v697 = vpop.f32.mrf.mxu0
        %v698 = vadd.f32 0.0, %v697
        %v699 = vpop.f32.mrf.mxu0
        %700 = vdwg.mxu0
        %v701 = vadd.f32 %v596, %v688
        %v702 = vadd.f32 %v596, %v690
        %v703 = vadd.f32 %v596, %v693
        %v704 = vadd.f32 %v596, %v695
        %v705 = vadd.f32 %v596, %v698
        %s706 = scalar_lea.vmem [#allocation9], 64
        %v707 = vld [vmem:[%s706] sm:$0xf]
        %v708 = vld [vmem:[%s706 + $0x4] sm:$0xf]
        %v709 = vld [vmem:[%s706 + $0x8] sm:$0xf]
        %v710 = vld [vmem:[%s706 + $0xc] sm:$0xf]
        %v711 = vld [vmem:[%s706 + $0x10] sm:$0xf]
        %v712 = vld [vmem:[%s706 + $0x14] sm:$0xf]
        %v713 = vld [vmem:[%s706 + $0x18] sm:$0xf]
        %v714 = vld [vmem:[%s706 + $0x1c] sm:$0xf]
        %v715 = vld [vmem:[%s706 + $0x20] sm:$0xf]
        %v716 = vld [vmem:[%s706 + $0x24] sm:$0xf]
        %v717 = vld [vmem:[%s706 + $0x28] sm:$0xf]
        %v718 = vld [vmem:[%s706 + $0x2c] sm:$0xf]
        %v719 = vld [vmem:[%s706 + $0x30] sm:$0xf]
        %v720 = vld [vmem:[%s706 + $0x34] sm:$0xf]
        %v721 = vld [vmem:[%s706 + $0x38] sm:$0xf]
        %v722 = vld [vmem:[%s706 + $0x3c] sm:$0xf]
        %v724 = vshrl.u32 %v624, 16
        %v726 = vshll.u32 %v624, 16
        %v728 = vrot.slane %v726, 1
        %v729 = vor.u32 %v724, %v728
        %v731 = vshll.u32 %v625, 16
        %v733 = vrot.slane %v731, 1
        %v734 = vsel %vm402, %v729, %v733
        %v735 = vshrl.u32 %v625, 16
        %v737 = vor.u32 %v735, %v733
        %v739 = vshll.u32 %v626, 16
        %v741 = vrot.slane %v739, 1
        %v742 = vsel %vm402, %v737, %v741
        %v743 = vshrl.u32 %v626, 16
        %v745 = vor.u32 %v743, %v741
        %v765 = vunpack.c.l.b16 %v707
        %v766 = vunpack.c.l.b16 %v708
        %v767 = vunpack.c.l.b16 %v709
        %v768 = vunpack.c.l.b16 %v710
        %v769 = vunpack.c.l.b16 %v711
        %v770 = vunpack.c.l.b16 %v712
        %v771 = vunpack.c.l.b16 %v713
        %v772 = vunpack.c.l.b16 %v714
        %v773 = vunpack.c.l.b16 %v715
        %v774 = vunpack.c.l.b16 %v716
        %v775 = vunpack.c.l.b16 %v717
        %v776 = vunpack.c.l.b16 %v718
        %v777 = vunpack.c.l.b16 %v719
        %v778 = vunpack.c.l.b16 %v720
        %v779 = vunpack.c.l.b16 %v721
        %v780 = vunpack.c.l.b16 %v722
        %v781 = vpack.c.b16 %v766, %v765
        %v782 = vpack.c.b16 %v768, %v767
        %v783 = vpack.c.b16 %v770, %v769
        %v784 = vpack.c.b16 %v772, %v771
        %v785 = vpack.c.b16 %v774, %v773
        %v786 = vpack.c.b16 %v776, %v775
        %v787 = vpack.c.b16 %v778, %v777
        %v788 = vpack.c.b16 %v780, %v779
        %797 = vmatpush.bf16.msra.mxu0 %v788
        %798 = vmatpush.bf16.msra.mxu0 %v787
        %799 = vmatpush.bf16.msra.mxu0 %v786
        %800 = vmatpush.bf16.msra.mxu0 %v785
        %801 = vmatpush.bf16.msra.mxu0 %v784
        %802 = vmatpush.bf16.msra.mxu0 %v783
        %803 = vmatpush.bf16.msra.mxu0 %v782
        %804 = vmatpush.bf16.msra.mxu0 %v781
        %805 = vmatmul.bf16.gmra.mxu0 %v734
        %v806 = vpop.f32.mrf.mxu0
        %v807 = vadd.f32 0.0, %v806
        %v808 = vpop.f32.mrf.mxu0
        %v809 = vadd.f32 0.0, %v808
        %810 = vmatmul.bf16.gmra.mxu0 %v742
        %v811 = vpop.f32.mrf.mxu0
        %v812 = vadd.f32 0.0, %v811
        %v813 = vpop.f32.mrf.mxu0
        %v814 = vadd.f32 0.0, %v813
        %815 = vmatmul.bf16.gmra.mxu0 %v745
        %v816 = vpop.f32.mrf.mxu0
        %v817 = vadd.f32 0.0, %v816
        %v818 = vpop.f32.mrf.mxu0
        %819 = vdwg.mxu0
        %v820 = vadd.f32 %v701, %v807
        %v821 = vadd.f32 %v702, %v809
        %v822 = vadd.f32 %v703, %v812
        %v823 = vadd.f32 %v704, %v814
        %v824 = vadd.f32 %v705, %v817
        %s825 = scalar_lea.vmem [#allocation9], 128
        %v826 = vld [vmem:[%s825] sm:$0xf]
        %v827 = vld [vmem:[%s825 + $0x4] sm:$0xf]
        %v828 = vld [vmem:[%s825 + $0x8] sm:$0xf]
        %v829 = vld [vmem:[%s825 + $0xc] sm:$0xf]
        %v830 = vld [vmem:[%s825 + $0x10] sm:$0xf]
        %v831 = vld [vmem:[%s825 + $0x14] sm:$0xf]
        %v832 = vld [vmem:[%s825 + $0x18] sm:$0xf]
        %v833 = vld [vmem:[%s825 + $0x1c] sm:$0xf]
        %v834 = vld [vmem:[%s825 + $0x20] sm:$0xf]
        %v835 = vld [vmem:[%s825 + $0x24] sm:$0xf]
        %v836 = vld [vmem:[%s825 + $0x28] sm:$0xf]
        %v837 = vld [vmem:[%s825 + $0x2c] sm:$0xf]
        %v838 = vld [vmem:[%s825 + $0x30] sm:$0xf]
        %v839 = vld [vmem:[%s825 + $0x34] sm:$0xf]
        %v840 = vld [vmem:[%s825 + $0x38] sm:$0xf]
        %v841 = vld [vmem:[%s825 + $0x3c] sm:$0xf]
        %v842 = vrot.slane %v624, 1
        %v843 = vrot.slane %v625, 1
        %v844 = vsel %vm493, %v842, %v843
        %v845 = vrot.slane %v626, 1
        %v846 = vsel %vm493, %v843, %v845
        %v866 = vunpack.c.l.b16 %v826
        %v867 = vunpack.c.l.b16 %v827
        %v868 = vunpack.c.l.b16 %v828
        %v869 = vunpack.c.l.b16 %v829
        %v870 = vunpack.c.l.b16 %v830
        %v871 = vunpack.c.l.b16 %v831
        %v872 = vunpack.c.l.b16 %v832
        %v873 = vunpack.c.l.b16 %v833
        %v874 = vunpack.c.l.b16 %v834
        %v875 = vunpack.c.l.b16 %v835
        %v876 = vunpack.c.l.b16 %v836
        %v877 = vunpack.c.l.b16 %v837
        %v878 = vunpack.c.l.b16 %v838
        %v879 = vunpack.c.l.b16 %v839
        %v880 = vunpack.c.l.b16 %v840
        %v881 = vunpack.c.l.b16 %v841
        %v882 = vpack.c.b16 %v867, %v866
        %v883 = vpack.c.b16 %v869, %v868
        %v884 = vpack.c.b16 %v871, %v870
        %v885 = vpack.c.b16 %v873, %v872
        %v886 = vpack.c.b16 %v875, %v874
        %v887 = vpack.c.b16 %v877, %v876
        %v888 = vpack.c.b16 %v879, %v878
        %v889 = vpack.c.b16 %v881, %v880
        %898 = vmatpush.bf16.msra.mxu0 %v889
        %899 = vmatpush.bf16.msra.mxu0 %v888
        %900 = vmatpush.bf16.msra.mxu0 %v887
        %901 = vmatpush.bf16.msra.mxu0 %v886
        %902 = vmatpush.bf16.msra.mxu0 %v885
        %903 = vmatpush.bf16.msra.mxu0 %v884
        %904 = vmatpush.bf16.msra.mxu0 %v883
        %905 = vmatpush.bf16.msra.mxu0 %v882
        %906 = vmatmul.bf16.gmra.mxu0 %v844
        %v907 = vpop.f32.mrf.mxu0
        %v908 = vadd.f32 0.0, %v907
        %v909 = vpop.f32.mrf.mxu0
        %v910 = vadd.f32 0.0, %v909
        %911 = vmatmul.bf16.gmra.mxu0 %v846
        %v912 = vpop.f32.mrf.mxu0
        %v913 = vadd.f32 0.0, %v912
        %v914 = vpop.f32.mrf.mxu0
        %v915 = vadd.f32 0.0, %v914
        %916 = vmatmul.bf16.gmra.mxu0 %v845
        %v917 = vpop.f32.mrf.mxu0
        %v918 = vadd.f32 0.0, %v917
        %v919 = vpop.f32.mrf.mxu0
        %920 = vdwg.mxu0
        %v921 = vadd.f32 %v820, %v908
        %v922 = vadd.f32 %v821, %v910
        %v923 = vadd.f32 %v822, %v913
        %v924 = vadd.f32 %v823, %v915
        %v925 = vadd.f32 %v824, %v918
        %vm926 = vcmp.gt.f32.partialorder %v921, 0.0
        %vm927 = vcmp.gt.f32.partialorder %v922, 0.0
        %vm928 = vcmp.gt.f32.partialorder %v923, 0.0
        %vm929 = vcmp.gt.f32.partialorder %v924, 0.0
        %vm930 = vcmp.gt.f32.partialorder %v925, 0.0
        %v931 = vmul.f32 %v921, 0.01
        %v932 = vmul.f32 %v922, 0.01
        %v933 = vmul.f32 %v923, 0.01
        %v934 = vmul.f32 %v924, 0.01
        %v935 = vmul.f32 %v925, 0.01
        %v936 = vsel %vm926, %v921, %v931
        %v937 = vsel %vm927, %v922, %v932
        %v938 = vsel %vm928, %v923, %v933
        %v939 = vsel %vm929, %v924, %v934
        %v940 = vsel %vm930, %v925, %v935
        %941 = vst [vmem:[%s278] sm:$0xff] %v936
        %942 = vst [vmem:[%s278 + $0x8] sm:$0xff] %v937
        %s943 = scalar_lea.vmem %s278, 16 [#allocation10]
        %944 = vst [vmem:[%s943 - $0x2] sm:$0xfc] %v938
        %945 = vst [vmem:[%s943 + $0x6] sm:$0xff] %v939
        %946 = vst [vmem:[%s943 + $0xe] sm:$0x3] %v940
        %s947 = sand.u32 %s141, 1
        %s948 = scalar_lea.sflag [#allocation6], %s947
        %s949 = sand.u32 %s141, 1
        %s950 = smul.addr %s949, 32
        %s951 = scalar_lea.vmem [#allocation10], %s950
        // Predicated region
        $region53: #{conv_block_packed.1} parent=39 // pred_check
          %p952 = pneg %p151
        $region54: #{conv_block_packed.1} parent=39 // pred_check_branch
          %954 = sbr.rel (%p952) target = $region56
        $region55: #{conv_block_packed.1} parent=39 // pred_region
          %s955 = smul.u32 2, %s23
          %957 = vsyncadd %s948, 0
          %s958 = smul.addr %s955, 2
          %s959 = smul.addr %s958, 8
          %s960 = scalar_lea.hbm %s5, %s959
          %s961 = sshll.u32 %s951, 4
          %s962 = int_to_ptr.vmem [resolvable:$true] %s961
          %s963 = sshll.u32 %s960, 4
          %s964 = int_to_ptr.hbm [resolvable:$true] %s963
          %969 = dma.vmem_to_hbm [thread:$0]  %s962, 512, %s964, %s948, 128, 128, 8
        $region56: #{conv_block_packed.1} parent=39 // pred_fallthru
          _
      $region40: #{conv_block_packed.1} parent=5 // pred_fallthru
        _
      %p970 = scmp.le.s32.totalorder 2, %s18
      // Predicated region
      $region57: #{conv_block_packed.1} parent=5 // pred_check
        %p971 = pneg %p970
      $region58: #{conv_block_packed.1} parent=5 // pred_check_branch
        %973 = sbr.rel (%p971) target = $region60
      $region59: #{conv_block_packed.1} parent=5 // pred_region
        %s974 = ssub.s32 %s18, 2
        // Predicated region
        $region61: #{conv_block_packed.1} parent=59 // pred_check
          %p975 = pneg %p157
        $region62: #{conv_block_packed.1} parent=59 // pred_check_branch
          %977 = sbr.rel (%p975) target = $region64
        $region63: #{conv_block_packed.1} parent=59 // pred_region
          %s978 = sand.u32 %s142, 1
          %s979 = scalar_lea.sflag [#allocation6], %s978
          %s980 = sand.u32 %s142, 1
          %s981 = smul.addr %s980, 32
          %s982 = scalar_lea.vmem [#allocation10], %s981
          %984 = dma.done %s979, 512
        $region64: #{conv_block_packed.1} parent=59 // pred_fallthru
          _
      $region60: #{conv_block_packed.1} parent=5 // pred_fallthru
        _
    $region6: #{conv_block_packed.1} parent=1 // loop_footer
      %s22 = sadd.s32 1, %s18
    $region7: #{conv_block_packed.1} parent=1 // loop_footer_branch
      %17 = sbr.rel target = $region3
    $region8: #{conv_block_packed.1} parent=1 // loop_exit
      _
    %985 = vsyncpa [#allocation5], 1
    %s986 = scalar_lea.sflag [#allocation5], 1
    %987 = vsyncpa %s986, 1
    %988 = vsyncpa [#allocation8], 1
    %989 = vsyncpa [#allocation6], 1
    %s990 = scalar_lea.sflag [#allocation6], 1
    %991 = vsyncpa %s990, 1

</llo_original>
